<compile_context>
chip_gen: v5e
topology: v5e:2x2
jax: 0.10.0
libtpu: 0.0.40
codegen_flags: <defaults>
</compile_context>

<pallas_src>
import functools

import jax
import jax.numpy as jnp
from jax.experimental import pallas as pl
from jax.experimental.pallas import tpu as pltpu


# ------------------------------ fused Pallas kernel --------------------------

def _fused_channel_activation_kernel(p_ref, w0_ref, b0_ref, weff_ref, o_ref):
    """conv1 (+bias+ReLU) and conv2(channel)+mean partials, all lane-dense.

    p_ref    : (R, Mb)   im2col patches for this lane block (R = KH*KW*Cin)
    w0_ref   : (C1, R)   conv1 weights, im2col (kh, kw, cin) order
    b0_ref   : (C1, 1)   conv1 bias
    weff_ref : (C1, Mb)  effective conv2(channel)+mean weights (1/M folded in)
    o_ref    : (1, Mb)   per-lane partial sums (summed in the wrapper)
    """
    # conv1 over all 3x3 taps as a single MXU matmul, bias + ReLU fused.
    a1 = jnp.dot(w0_ref[...], p_ref[...], preferred_element_type=jnp.float32)
    a1 = jnp.maximum(a1 + b0_ref[...], 0.0)                        # (C1, Mb)
    # conv2 single channel + mean via exchange-of-sums: one multiply + reduce.
    o_ref[...] = jnp.sum(a1 * weff_ref[...], axis=0, keepdims=True)


def _make_fused_call(C1, R, M, Mb):
    return pl.pallas_call(
        _fused_channel_activation_kernel,
        out_shape=jax.ShapeDtypeStruct((1, M), jnp.float32),
        grid=(M // Mb,),
        in_specs=[
            pl.BlockSpec((R, Mb), lambda g: (0, g)),     # patches (lane block g)
            pl.BlockSpec((C1, R), lambda g: (0, 0)),     # conv1 weights, resident
            pl.BlockSpec((C1, 1), lambda g: (0, 0)),     # conv1 bias, resident
            pl.BlockSpec((C1, Mb), lambda g: (0, g)),    # effective conv2 weights
        ],
        out_specs=pl.BlockSpec((1, Mb), lambda g: (0, g)),
        compiler_params=pltpu.CompilerParams(
            dimension_semantics=("parallel",)),          # lets v7x use both TCs
    )


# ------------------------------ wrapper ---------------------------------------

@functools.partial(jax.jit, static_argnames=("channel",))
def channel_activation_forward(x_nchw, w0, b0, w1, b1, *, channel):
    """ChannelActivation.forward for the conv -> ReLU -> conv prefix (layer=2)."""
    N, Cin, H, W = x_nchw.shape
    C1, _, KH, KW = w0.shape
    M, R = N * H * W, KH * KW * Cin

    x = x_nchw.astype(jnp.float32)
    xp = jnp.pad(x, ((0, 0), (0, 0), (1, 1), (1, 1)))              # zero padding

    # im2col patch matrix (R, M): rows = (kh, kw, cin), cols = (n, h, w).
    taps = jnp.stack([xp[:, :, kh:kh + H, kw:kw + W]
                      for kh in range(KH) for kw in range(KW)], axis=0)
    patches = jnp.transpose(taps, (0, 2, 1, 3, 4)).reshape(R, M)

    # conv1 weights OIHW -> (C1, (kh, kw, cin)) matching the patch row order.
    w0t = jnp.transpose(w0, (0, 2, 3, 1)).reshape(C1, R).astype(jnp.float32)
    b0c = b0.reshape(C1, 1).astype(jnp.float32)

    # Effective weights for conv2(channel) + mean (exchange of sums):
    #   result = b1[ch] + sum_{c1,m} a1[c1, m] * W_eff[c1, m]
    # with W_eff[c1, (n,h,w)] = (1/M) * sum over taps (kh,kw) valid at (h, w)
    # of w1[ch, c1, kh, kw].  Only 3x3 boundary classes -> built once here.
    w1ch = w1[channel].astype(jnp.float32)                          # (C1, KH, KW)
    h_idx, w_idx = jnp.arange(H), jnp.arange(W)
    weff_hw = jnp.zeros((C1, H, W), jnp.float32)
    for kh in range(KH):
        vh = (h_idx >= max(kh - 1, 0)) & (h_idx <= min(kh + H - 2, H - 1))
        for kw in range(KW):
            vw = (w_idx >= max(kw - 1, 0)) & (w_idx <= min(kw + W - 2, W - 1))
            msk = (vh[:, None] & vw[None, :]).astype(jnp.float32)
            weff_hw = weff_hw + w1ch[:, kh, kw][:, None, None] * msk[None]
    weff = jnp.broadcast_to(weff_hw[:, None], (C1, N, H, W)).reshape(C1, M)
    weff = weff * jnp.float32(1.0 / M)

    Mb = 256 if M % 256 == 0 else M                                 # lane block
    row = _make_fused_call(C1, R, M, Mb)(patches, w0t, b0c, weff)   # (1, M)
    return jnp.sum(row) + b1[channel].astype(jnp.float32)


# ------------------------------ synthetic model --------------------------------

class SimpleConvModel:
    """Stand-in for the wrapped nn.Module: an ordered list of layers."""

    def __init__(self, key):
        k0, k1 = jax.random.split(key)
        w0 = jax.random.normal(k0, (8, 4, 3, 3), jnp.float32) * 0.1   # OIHW
        b0 = jnp.linspace(-0.1, 0.1, 8).astype(jnp.float32)
        w1 = jax.random.normal(k1, (8, 8, 3, 3), jnp.float32) * 0.1   # OIHW
        b1 = jnp.linspace(0.1, -0.1, 8).astype(jnp.float32)
        self.layers = [("conv", w0, b0), ("relu",), ("conv", w1, b1), ("relu",)]


# -------------------------- pure-JAX reference check ---------------------------

def _reference_forward(model, layer, channel, x_nchw):
    x = x_nchw
    for i in range(layer + 1):
        l = model.layers[i]
        if l[0] == "conv":
            x = jax.lax.conv_general_dilated(
                x, l[1], window_strides=(1, 1), padding=((1, 1), (1, 1)),
                dimension_numbers=("NCHW", "OIHW", "NCHW"))
            x = x + l[2][None, :, None, None]
        else:
            x = jnp.maximum(x, 0.0)
    return jnp.mean(x[:, channel])


# ---------------------------------- main ----------------------------------------

if __name__ == "__main__":
    key = jax.random.PRNGKey(0)
    k_x, k_m = jax.random.split(key)

    x = jax.random.normal(k_x, (2, 4, 16, 16), jnp.float32)   # NCHW like PyTorch
    model = SimpleConvModel(k_m)
    layer, channel = 2, 3

    # Fused kernel covers exactly layers[0..layer] = conv, ReLU, conv.
    (_, w0, b0), _, (_, w1, b1), _ = model.layers
    result = channel_activation_forward(x, w0, b0, w1, b1, channel=channel)
    result = jax.block_until_ready(result)

    ref = _reference_forward(model, layer, channel, x)
    assert jnp.allclose(result, ref, atol=1e-3, rtol=1e-3), (result, ref)

    print("KERNEL_OK")
</pallas_src>

<mosaic_0001>
module attributes {stable_mosaic.version = 11 : i64} {
  func.func @_fused_channel_activation_kernel(%arg0: i32, %arg1: memref<36x256xf32, #tpu.memory_space<vmem>>, %arg2: memref<8x36xf32, #tpu.memory_space<vmem>>, %arg3: memref<8x1xf32, #tpu.memory_space<vmem>>, %arg4: memref<8x256xf32, #tpu.memory_space<vmem>>, %arg5: memref<1x256xf32, #tpu.memory_space<vmem>>) attributes {dimension_semantics = [#tpu.dimension_semantics<parallel>], iteration_bounds = array<i64: 2>, scalar_prefetch = 0 : i64, scratch_operands = 0 : i64, tpu.core_type = #tpu.core_type<tc>, window_params = [{transform_indices = @transform_0, window_bounds = array<i64: 36, 256>}, {pipeline_mode = #tpu.pipeline_mode<synchronous>, transform_indices = @transform_1, window_bounds = array<i64: 8, 36>}, {pipeline_mode = #tpu.pipeline_mode<synchronous>, transform_indices = @transform_2, window_bounds = array<i64: 8, 1>}, {transform_indices = @transform_3, window_bounds = array<i64: 8, 256>}, {transform_indices = @transform_4, window_bounds = array<i64: 1, 256>}]} {
    %c0 = arith.constant 0 : index
    %c0_0 = arith.constant 0 : index
    %0 = vector.load %arg2[%c0, %c0_0] : memref<8x36xf32, #tpu.memory_space<vmem>>, vector<8x36xf32>
    %c0_1 = arith.constant 0 : index
    %c0_2 = arith.constant 0 : index
    %1 = vector.load %arg1[%c0_1, %c0_2] : memref<36x256xf32, #tpu.memory_space<vmem>>, vector<36x256xf32>
    %cst = arith.constant dense<0.000000e+00> : vector<8x256xf32>
    %2 = tpu.matmul %0, %1, %cst {dimension_numbers = #tpu.dot_dimension_numbers<[1], [0], [0], [1], [0, 0, 1, 1], [], []>} : vector<8x36xf32>, vector<36x256xf32>, vector<8x256xf32> -> vector<8x256xf32>
    %c0_3 = arith.constant 0 : index
    %c0_4 = arith.constant 0 : index
    %3 = vector.load %arg3[%c0_3, %c0_4] : memref<8x1xf32, #tpu.memory_space<vmem>>, vector<8x1xf32>
    %4 = vector.broadcast %3 : vector<8x1xf32> to vector<8x256xf32>
    %5 = arith.addf %2, %4 : vector<8x256xf32>
    %cst_5 = arith.constant 0.000000e+00 : f32
    %6 = vector.broadcast %cst_5 : f32 to vector<8x256xf32>
    %7 = arith.maximumf %5, %6 : vector<8x256xf32>
    %c0_6 = arith.constant 0 : index
    %c0_7 = arith.constant 0 : index
    %8 = vector.load %arg4[%c0_6, %c0_7] : memref<8x256xf32, #tpu.memory_space<vmem>>, vector<8x256xf32>
    %9 = arith.mulf %7, %8 : vector<8x256xf32>
    %cst_8 = arith.constant dense<0.000000e+00> : vector<256xf32>
    %10 = vector.multi_reduction <add>, %9, %cst_8 [0] : vector<8x256xf32> to vector<256xf32>
    %11 = vector.shape_cast %10 : vector<256xf32> to vector<1x256xf32>
    %c0_9 = arith.constant 0 : index
    %c0_10 = arith.constant 0 : index
    %12 = vector.load %arg5[%c0_9, %c0_10] : memref<1x256xf32, #tpu.memory_space<vmem>>, vector<1x256xf32>
    tpu.vector_store %arg5[%c0_9, %c0_10], %11 {strides = array<i32>} : memref<1x256xf32, #tpu.memory_space<vmem>>, vector<1x256xf32>,
    return
  }
  func.func @transform_0(%arg0: i32) -> (i32, i32) {
    %c0_i32 = arith.constant 0 : i32
    %c0_i32_0 = arith.constant 0 : i32
    return %c0_i32, %arg0 : i32, i32
  }
  func.func @transform_1(%arg0: i32) -> (i32, i32) {
    %c0_i32 = arith.constant 0 : i32
    %c0_i32_0 = arith.constant 0 : i32
    %c0_i32_1 = arith.constant 0 : i32
    return %c0_i32, %c0_i32_0 : i32, i32
  }
  func.func @transform_2(%arg0: i32) -> (i32, i32) {
    %c0_i32 = arith.constant 0 : i32
    %c0_i32_0 = arith.constant 0 : i32
    %c0_i32_1 = arith.constant 0 : i32
    return %c0_i32, %c0_i32_0 : i32, i32
  }
  func.func @transform_3(%arg0: i32) -> (i32, i32) {
    %c0_i32 = arith.constant 0 : i32
    %c0_i32_0 = arith.constant 0 : i32
    return %c0_i32, %arg0 : i32, i32
  }
  func.func @transform_4(%arg0: i32) -> (i32, i32) {
    %c0_i32 = arith.constant 0 : i32
    %c0_i32_0 = arith.constant 0 : i32
    return %c0_i32, %arg0 : i32, i32
  }
}

</mosaic_0001>

<llo_original>
// kernel: channel_activation_forward.1
$region0: #{channel_activation_forward.1}
  #allocation0 [shape = 'u32[]', space=smem, size = 0x4, offset = 0x4, fixed_abs, tag = 'smem constant byte address 0x4 - core index']
  #allocation1 [shape = 'u32[72,128]{1,0:T(1,128)}', space=vmem, size = 0x9000, scoped, tag = 'internal scratch']
  %s0 = inlined_call_operand.vmem [shape: f32[36,512], index: 0, kind: input, shape index: {}]
  %s1 = inlined_call_operand.vmem [shape: f32[8,36], index: 1, kind: input, shape index: {}]
  %s2 = inlined_call_operand.vmem [shape: f32[8,1], index: 2, kind: input, shape index: {}]
  %s3 = inlined_call_operand.vmem [shape: f32[8,512], index: 3, kind: input, shape index: {}]
  %s4 = inlined_call_operand.vmem [shape: f32[1,512], index: 4, kind: output, shape index: {}]
  %s5 = sld [smem:[#allocation0]]
  $region72: #{channel_activation_forward.1} parent=0
    _
  %s7 = ssub.s32 1, %s5
  %s8 = scalar_select 0, %s7, %s5
  $region1: #{channel_activation_forward.1} parent=0
    #allocation2 [shape = 'u8[81920]{0}', space=vmem, size = 0x14000, scoped, tag = 'input window, operand 0']
    loop: start=0, step=1, limit=4
    $region2: #{channel_activation_forward.1} parent=1 // loop_pre_header
      _
    $region3: #{channel_activation_forward.1} parent=1 // loop_header
      %s10 = sphi 0, %s14
      %p11 = scmp.ge.s32.totalorder %s10, 4
      %s20 = sphi 0, %s22
      %s23 = sphi 0, %s20
      %s24 = sphi 0, %s23
      %s40 = sphi 0, %s24
      %s44 = sphi 0, %s44
      %s46 = sphi 0, %s44
      %s47 = sphi 0, %s46
      %s61 = sphi 0, %s47
      %s65 = sphi 0, %s65
      %s67 = sphi 0, %s65
      %s68 = sphi 0, %s67
      %s82 = sphi 0, %s68
      %s88 = sphi 0, %s90
      %s91 = sphi 0, %s88
      %s92 = sphi 0, %s91
      %s108 = sphi 0, %s92
      %s114 = sphi 0, %s116
      %s117 = sphi 0, %s114
      %s118 = sphi 0, %s117
      %s134 = sphi 0, %s118
    $region4: #{channel_activation_forward.1} parent=1 // loop_header_branch
      %13 = sbr.rel (%p11) target = $region8
    $region5: #{channel_activation_forward.1} parent=1 // loop_body
      %s15 = ssub.s32 %s10, 1
      %s16 = ssub.s32 %s10, 2
      %s17 = sadd.s32 %s10, 1
      %s18 = ssub.s32 %s10, %s17
      %p19 = scmp.eq.s32.totalorder %s18, 0
      %s21 = sadd.s32 %s20, 1
      %s22 = scalar_select %p19, %s20, %s21
      %p25 = pneg %p19
      %p26 = scmp.eq.s32.totalorder %s10, 1
      %p27 = por %p25, %p26
      %p28 = scmp.ne.s32.totalorder %s20, %s23
      %p29 = scmp.eq.s32.totalorder %s10, 0
      %p30 = por %p28, %p29
      %p31 = scmp.ne.s32.totalorder %s20, %s23
      %p32 = scmp.eq.s32.totalorder %s15, 1
      %p33 = por %p31, %p32
      %p34 = scmp.ne.s32.totalorder %s23, %s24
      %p35 = scmp.eq.s32.totalorder %s15, 0
      %p36 = por %p34, %p35
      %p37 = scmp.ne.s32.totalorder %s23, %s24
      %p38 = scmp.eq.s32.totalorder %s16, 1
      %p39 = por %p37, %p38
      %p41 = scmp.ne.s32.totalorder %s24, %s40
      %p42 = scmp.eq.s32.totalorder %s16, 0
      %p43 = por %p41, %p42
      %s45 = sadd.s32 %s44, 1
      %p48 = scmp.eq.s32.totalorder %s10, 1
      %p49 = scmp.ne.s32.totalorder %s44, %s46
      %p50 = scmp.eq.s32.totalorder %s10, 0
      %p51 = por %p49, %p50
      %p52 = scmp.ne.s32.totalorder %s44, %s46
      %p53 = scmp.eq.s32.totalorder %s15, 1
      %p54 = por %p52, %p53
      %p55 = scmp.ne.s32.totalorder %s46, %s47
      %p56 = scmp.eq.s32.totalorder %s15, 0
      %p57 = por %p55, %p56
      %p58 = scmp.ne.s32.totalorder %s46, %s47
      %p59 = scmp.eq.s32.totalorder %s16, 1
      %p60 = por %p58, %p59
      %p62 = scmp.ne.s32.totalorder %s47, %s61
      %p63 = scmp.eq.s32.totalorder %s16, 0
      %p64 = por %p62, %p63
      %s66 = sadd.s32 %s65, 1
      %p69 = scmp.eq.s32.totalorder %s10, 1
      %p70 = scmp.ne.s32.totalorder %s65, %s67
      %p71 = scmp.eq.s32.totalorder %s10, 0
      %p72 = por %p70, %p71
      %p73 = scmp.ne.s32.totalorder %s65, %s67
      %p74 = scmp.eq.s32.totalorder %s15, 1
      %p75 = por %p73, %p74
      %p76 = scmp.ne.s32.totalorder %s67, %s68
      %p77 = scmp.eq.s32.totalorder %s15, 0
      %p78 = por %p76, %p77
      %p79 = scmp.ne.s32.totalorder %s67, %s68
      %p80 = scmp.eq.s32.totalorder %s16, 1
      %p81 = por %p79, %p80
      %p83 = scmp.ne.s32.totalorder %s68, %s82
      %p84 = scmp.eq.s32.totalorder %s16, 0
      %p85 = por %p83, %p84
      %s86 = ssub.s32 %s10, %s17
      %p87 = scmp.eq.s32.totalorder %s86, 0
      %s89 = sadd.s32 %s88, 1
      %s90 = scalar_select %p87, %s88, %s89
      %p93 = pneg %p87
      %p94 = scmp.eq.s32.totalorder %s10, 1
      %p95 = por %p93, %p94
      %p96 = scmp.ne.s32.totalorder %s88, %s91
      %p97 = scmp.eq.s32.totalorder %s10, 0
      %p98 = por %p96, %p97
      %p99 = scmp.ne.s32.totalorder %s88, %s91
      %p100 = scmp.eq.s32.totalorder %s15, 1
      %p101 = por %p99, %p100
      %p102 = scmp.ne.s32.totalorder %s91, %s92
      %p103 = scmp.eq.s32.totalorder %s15, 0
      %p104 = por %p102, %p103
      %p105 = scmp.ne.s32.totalorder %s91, %s92
      %p106 = scmp.eq.s32.totalorder %s16, 1
      %p107 = por %p105, %p106
      %p109 = scmp.ne.s32.totalorder %s92, %s108
      %p110 = scmp.eq.s32.totalorder %s16, 0
      %p111 = por %p109, %p110
      %s112 = ssub.s32 %s10, %s17
      %p113 = scmp.eq.s32.totalorder %s112, 0
      %s115 = sadd.s32 %s114, 1
      %s116 = scalar_select %p113, %s114, %s115
      %p119 = pneg %p113
      %p120 = scmp.eq.s32.totalorder %s10, 1
      %p121 = por %p119, %p120
      %p122 = scmp.ne.s32.totalorder %s114, %s117
      %p123 = scmp.eq.s32.totalorder %s10, 0
      %p124 = por %p122, %p123
      %p125 = scmp.ne.s32.totalorder %s114, %s117
      %p126 = scmp.eq.s32.totalorder %s15, 1
      %p127 = por %p125, %p126
      %p128 = scmp.ne.s32.totalorder %s117, %s118
      %p129 = scmp.eq.s32.totalorder %s15, 0
      %p130 = por %p128, %p129
      %p131 = scmp.ne.s32.totalorder %s117, %s118
      %p132 = scmp.eq.s32.totalorder %s16, 1
      %p133 = por %p131, %p132
      %p135 = scmp.ne.s32.totalorder %s118, %s134
      %p136 = scmp.eq.s32.totalorder %s16, 0
      %p137 = por %p135, %p136
      %p138 = scmp.le.s32.totalorder 1, %s10
      %p139 = scmp.lt.s32.totalorder %s10, 3
      %p140 = pnand %p138, %p139
      %p141 = pneg %p140
      // Predicated region
      $region9: #{channel_activation_forward.1} parent=5 // pred_check
        _
      $region10: #{channel_activation_forward.1} parent=5 // pred_check_branch
        %143 = sbr.rel (%p140) target = $region12
      $region11: #{channel_activation_forward.1} parent=5 // pred_region
        %s144 = ssub.s32 %s10, 1
        // Predicated region
        $region13: #{channel_activation_forward.1} parent=11 // pred_check
          %p145 = pneg %p57
        $region14: #{channel_activation_forward.1} parent=11 // pred_check_branch
          %147 = sbr.rel (%p145) target = $region16
        $region15: #{channel_activation_forward.1} parent=11 // pred_region
          _
        $region16: #{channel_activation_forward.1} parent=11 // pred_fallthru
          _
        // Predicated region
        $region17: #{channel_activation_forward.1} parent=11 // pred_check
          %p148 = pneg %p78
        $region18: #{channel_activation_forward.1} parent=11 // pred_check_branch
          %150 = sbr.rel (%p148) target = $region20
        $region19: #{channel_activation_forward.1} parent=11 // pred_region
          _
        $region20: #{channel_activation_forward.1} parent=11 // pred_fallthru
          _
      $region12: #{channel_activation_forward.1} parent=5 // pred_fallthru
        _
      %p151 = scmp.lt.s32.totalorder %s10, 2
      // Predicated region
      $region21: #{channel_activation_forward.1} parent=5 // pred_check
        %p152 = pneg %p151
      $region22: #{channel_activation_forward.1} parent=5 // pred_check_branch
        %154 = sbr.rel (%p152) target = $region24
      $region23: #{channel_activation_forward.1} parent=5 // pred_region
        // Predicated region
        $region25: #{channel_activation_forward.1} parent=23 // pred_check
          %p155 = pneg %p30
        $region26: #{channel_activation_forward.1} parent=23 // pred_check_branch
          %157 = sbr.rel (%p155) target = $region28
        $region27: #{channel_activation_forward.1} parent=23 // pred_region
          %s158 = sand.u32 %s20, 1
          %s159 = sand.u32 %s20, 1
          %s160 = smul.addr %s159, 80
          %s161 = scalar_lea.vmem [#allocation2], %s160
          %s162 = smul.u32 2, %s10
          %s163 = smul.addr %s162, 8
          %s164 = scalar_lea.vmem %s0, %s163
          // Predicated region
          $region29: #{channel_activation_forward.1} parent=27 // pred_check
            _
          $region30: #{channel_activation_forward.1} parent=27 // pred_check_branch
            %166 = sbr.rel (0) target = $region32
          $region31: #{channel_activation_forward.1} parent=27 // pred_region
            // Predicated region
            $region33: #{channel_activation_forward.1} parent=31 // pred_check
              _
            $region34: #{channel_activation_forward.1} parent=31 // pred_check_branch
              %168 = sbr.rel (0) target = $region36
            $region35: #{channel_activation_forward.1} parent=31 // pred_region
              loop: start=0, step=1, limit=1
              $region37: #{channel_activation_forward.1} parent=35 // loop_pre_header
                _
              $region38: #{channel_activation_forward.1} parent=35 // loop_header
                %s170 = sphi 0, %s174
                %p171 = scmp.ge.s32.totalorder %s170, 1
                %s175 = sphi %s164, %s164
                %s176 = sphi %s161, %s161
              $region39: #{channel_activation_forward.1} parent=35 // loop_header_branch
                %173 = sbr.rel (%p171) target = $region43
              $region40: #{channel_activation_forward.1} parent=35 // loop_body
                %v177 = vld [vmem:[%s175] sm:$0xff]
                %178 = vst [vmem:[%s176] sm:$0xff] %v177
                %v179 = vld [vmem:[%s175 + $0x8] sm:$0xff]
                %180 = vst [vmem:[%s176 + $0x8] sm:$0xff] %v179
                %v181 = vld [vmem:[%s175 + $0x20] sm:$0xff]
                %182 = vst [vmem:[%s176 + $0x10] sm:$0xff] %v181
                %v183 = vld [vmem:[%s175 + $0x28] sm:$0xff]
                %184 = vst [vmem:[%s176 + $0x18] sm:$0xff] %v183
                %v185 = vld [vmem:[%s175 + $0x40] sm:$0xff]
                %186 = vst [vmem:[%s176 + $0x20] sm:$0xff] %v185
                %v187 = vld [vmem:[%s175 + $0x48] sm:$0xff]
                %188 = vst [vmem:[%s176 + $0x28] sm:$0xff] %v187
                %v189 = vld [vmem:[%s175 + $0x60] sm:$0xff]
                %190 = vst [vmem:[%s176 + $0x30] sm:$0xff] %v189
                %v191 = vld [vmem:[%s175 + $0x68] sm:$0xff]
                %192 = vst [vmem:[%s176 + $0x38] sm:$0xff] %v191
                %v193 = vld [vmem:[%s175 + $0x80] sm:$0xff]
                %194 = vst [vmem:[%s176 + $0x40] sm:$0xff] %v193
                %v195 = vld [vmem:[%s175 + $0x88] sm:$0xff]
                %196 = vst [vmem:[%s176 + $0x48] sm:$0xff] %v195
              $region41: #{channel_activation_forward.1} parent=35 // loop_footer
                %s174 = sadd.s32 1, %s170
              $region42: #{channel_activation_forward.1} parent=35 // loop_footer_branch
                %169 = sbr.rel target = $region38
              $region43: #{channel_activation_forward.1} parent=35 // loop_exit
                _
            $region36: #{channel_activation_forward.1} parent=31 // pred_fallthru
              _
            // Predicated region
            $region44: #{channel_activation_forward.1} parent=31 // pred_check
              _
            $region45: #{channel_activation_forward.1} parent=31 // pred_check_branch
              %198 = sbr.rel target = $region47
            $region46: #{channel_activation_forward.1} parent=31 // pred_region
              _
            $region47: #{channel_activation_forward.1} parent=31 // pred_fallthru
              _
          $region32: #{channel_activation_forward.1} parent=27 // pred_fallthru
            _
          %199 = vnop
        $region28: #{channel_activation_forward.1} parent=23 // pred_fallthru
          _
        // Predicated region
        $region48: #{channel_activation_forward.1} parent=23 // pred_check
          %p200 = pneg %p98
        $region49: #{channel_activation_forward.1} parent=23 // pred_check_branch
          %202 = sbr.rel (%p200) target = $region51
        $region50: #{channel_activation_forward.1} parent=23 // pred_region
          %s203 = smul.u32 2, %s10
          %p204 = scmp.lt.s32.totalorder %s203, 3
          %s205 = scalar_select %p204, %s203, 3
          %s206 = smul.addr %s205, 8
          %s207 = scalar_lea.vmem %s3, %s206
          %s208 = smul.u32 2, %s10
        $region51: #{channel_activation_forward.1} parent=23 // pred_fallthru
          _
      $region24: #{channel_activation_forward.1} parent=5 // pred_fallthru
        _
      %p209 = scmp.le.s32.totalorder 1, %s10
      %p210 = scmp.lt.s32.totalorder %s10, 3
      %p211 = pnand %p209, %p210
      %p212 = pneg %p211
      // Predicated region
      $region52: #{channel_activation_forward.1} parent=5 // pred_check
        _
      $region53: #{channel_activation_forward.1} parent=5 // pred_check_branch
        %214 = sbr.rel (%p211) target = $region55
      $region54: #{channel_activation_forward.1} parent=5 // pred_region
        %s215 = ssub.s32 %s10, 1
        %s216 = sand.u32 %s23, 1
        %s217 = sand.u32 %s23, 1
        %s218 = smul.addr %s217, 80
        %s219 = scalar_lea.vmem [#allocation2], %s218
        // Predicated region
        $region56: #{channel_activation_forward.1} parent=54 // pred_check
          %p220 = pneg %p36
        $region57: #{channel_activation_forward.1} parent=54 // pred_check_branch
          %222 = sbr.rel (%p220) target = $region59
        $region58: #{channel_activation_forward.1} parent=54 // pred_region
          _
        $region59: #{channel_activation_forward.1} parent=54 // pred_fallthru
          _
        %s223 = sand.u32 %s23, 1
        %s224 = sand.u32 %s23, 1
        %s225 = smul.addr %s224, 80
        %s226 = scalar_lea.vmem [#allocation2], %s225
        %p227 = pneg %p36
        %p228 = pneg %p33
        %p229 = pneg %p57
        %p230 = pneg %p54
        %p231 = pneg %p78
        %p232 = pneg %p75
        %s233 = smul.u32 2, %s15
        %p234 = scmp.lt.s32.totalorder %s233, 3
        %s235 = scalar_select %p234, %s233, 3
        %s236 = smul.addr %s235, 8
        %s237 = scalar_lea.vmem %s3, %s236
        %p238 = pneg %p104
        %p239 = pneg %p101
        %p240 = pneg %p130
        %p241 = pneg %p127
        %s242 = smul.u32 2, %s15
        %p243 = scmp.lt.s32.totalorder %s242, 3
        %s244 = scalar_select %p243, %s242, 3
        %s245 = scalar_lea.vmem %s4, %s244
        %s246 = smul.u32 2, %s15
        %s247 = smul.u32 2, %s15
        %p248 = scmp.lt.s32.totalorder %s247, 3
        %s249 = scalar_select %p248, %s247, 3
        %s250 = smul.addr %s249, 8
        %s251 = scalar_lea.vmem %s3, %s250
        %s252 = smul.u32 2, %s15
        %s253 = smul.u32 2, %s15
        %p254 = scmp.lt.s32.totalorder %s253, 3
        %s255 = scalar_select %p254, %s253, 3
        %s256 = scalar_lea.vmem %s4, %s255
        %s257 = smul.u32 2, %s15
        %v258 = vld [vmem:[%s1] sm:$0xff]
        %v259 = vld [vmem:[%s219] sm:$0xff]
        %v260 = vld [vmem:[%s219 + $0x8] sm:$0xff]
        %v261 = vld [vmem:[%s219 + $0x10] sm:$0xff]
        %v262 = vld [vmem:[%s219 + $0x18] sm:$0xff]
        %v263 = vld [vmem:[%s219 + $0x20] sm:$0xff]
        %v264 = vld [vmem:[%s219 + $0x28] sm:$0xff]
        %v265 = vld [vmem:[%s219 + $0x30] sm:$0xff]
        %v266 = vld [vmem:[%s219 + $0x38] sm:$0xff]
        %v267 = vld [vmem:[%s219 + $0x40] sm:$0xf]
        %v268 = vld [vmem:[%s219 + $0x48] sm:$0xf]
        %v269 = vld [vmem:[%s2] sm:$0xff]
        %271 = vset.pattern.permute.xlu0 0
        %272 = vperm.xlu0 %271, %v269
        %v273 = vpop.permute.xlu0 %272
        %vm275 = vcmask 293888
        %v277 = vsel %vm275, %v258, 0
        %vm279 = vcmask 1043456
        %v281 = vsel %vm279, %v267, 0
        %v284 = vsel %vm279, %v268, 0
        %286 = vmatpush.msra.mxu0 0.0
        %287 = vmatpush.msra.mxu0 0.0
        %288 = vmatpush.msra.mxu0 0.0
        %289 = vmatpush.msra.mxu0 0.0
        %290 = vmatpush.msra.mxu0 0.0
        %291 = vmatpush.msra.mxu0 0.0
        %292 = vmatpush.msra.mxu0 0.0
        %293 = vmatpush.msra.mxu0 0.0
        %294 = vmatpush.msra.mxu0 0.0
        %295 = vmatpush.msra.mxu0 0.0
        %296 = vmatpush.msra.mxu0 0.0
        %297 = vmatpush.msra.mxu0 %v281
        %298 = vmatpush.msra.mxu0 %v265
        %299 = vmatpush.msra.mxu0 %v263
        %300 = vmatpush.msra.mxu0 %v261
        %301 = vmatpush.msra.mxu0 %v259
        %302 = vmatmul.f32.gmra.mxu0 %v277
        %v303 = vpop.f32.mrf.mxu0
        %v304 = vadd.f32 %v273, %v303
        %305 = vdwg.mxu0
        %306 = vmatpush.msra.mxu0 0.0
        %307 = vmatpush.msra.mxu0 0.0
        %308 = vmatpush.msra.mxu0 0.0
        %309 = vmatpush.msra.mxu0 0.0
        %310 = vmatpush.msra.mxu0 0.0
        %311 = vmatpush.msra.mxu0 0.0
        %312 = vmatpush.msra.mxu0 0.0
        %313 = vmatpush.msra.mxu0 0.0
        %314 = vmatpush.msra.mxu0 0.0
        %315 = vmatpush.msra.mxu0 0.0
        %316 = vmatpush.msra.mxu0 0.0
        %317 = vmatpush.msra.mxu0 %v284
        %318 = vmatpush.msra.mxu0 %v266
        %319 = vmatpush.msra.mxu0 %v264
        %320 = vmatpush.msra.mxu0 %v262
        %321 = vmatpush.msra.mxu0 %v260
        %322 = vmatmul.f32.gmra.mxu0 %v277
        %v323 = vpop.f32.mrf.mxu0
        %v324 = vadd.f32 %v273, %v323
        %325 = vdwg.mxu0
        %v326 = vmax.f32 %v304, 0.0
        %v327 = vmax.f32 %v324, 0.0
        %v328 = vld [vmem:[%s251] sm:$0xff]
        %v329 = vld [vmem:[%s251 + $0x8] sm:$0xff]
        %v330 = vmul.f32 %v326, %v328
        %v331 = vmul.f32 %v327, %v329
        %v332 = vrot.slane %v330, 4
        %v333 = vadd.f32 %v330, %v332
        %v334 = vrot.slane %v333, 2
        %v335 = vadd.f32 %v333, %v334
        %v336 = vrot.slane %v335, 1
        %v337 = vadd.f32 %v335, %v336
        %v338 = vrot.slane %v331, 4
        %v339 = vadd.f32 %v331, %v338
        %v340 = vrot.slane %v339, 2
        %v341 = vadd.f32 %v339, %v340
        %v342 = vrot.slane %v341, 1
        %v343 = vadd.f32 %v341, %v342
        %v346 = vrot.slane %v343, 7
        %vm347 = vcmask 1040384
        %v348 = vsel %vm347, %v337, %v346
        %v350 = vlaneseq
        %vm351 = vcmp.ge.s32.totalorder %v350, 0
        %vm352 = vcmp.lt.s32.totalorder %v350, 256
        %vm353 = vmand %vm351, %vm352
        %354 = vst.msk [vmem:[%s256] sm:$0x3] %vm353, %v348
        %s355 = smul.u32 2, %s15
        %p356 = scmp.lt.s32.totalorder %s355, 3
        %s357 = scalar_select %p356, %s355, 3
        %s358 = scalar_lea.vmem %s4, %s357
        // Predicated region
        $region60: #{channel_activation_forward.1} parent=54 // pred_check
          %p359 = pneg %p127
        $region61: #{channel_activation_forward.1} parent=54 // pred_check_branch
          %361 = sbr.rel (%p359) target = $region63
        $region62: #{channel_activation_forward.1} parent=54 // pred_region
          %s362 = smul.u32 2, %s15
        $region63: #{channel_activation_forward.1} parent=54 // pred_fallthru
          _
      $region55: #{channel_activation_forward.1} parent=5 // pred_fallthru
        _
      %p363 = scmp.le.s32.totalorder 2, %s10
      // Predicated region
      $region64: #{channel_activation_forward.1} parent=5 // pred_check
        %p364 = pneg %p363
      $region65: #{channel_activation_forward.1} parent=5 // pred_check_branch
        %366 = sbr.rel (%p364) target = $region67
      $region66: #{channel_activation_forward.1} parent=5 // pred_region
        %s367 = ssub.s32 %s10, 2
        // Predicated region
        $region68: #{channel_activation_forward.1} parent=66 // pred_check
          %p368 = pneg %p133
        $region69: #{channel_activation_forward.1} parent=66 // pred_check_branch
          %370 = sbr.rel (%p368) target = $region71
        $region70: #{channel_activation_forward.1} parent=66 // pred_region
          %s371 = smul.u32 2, %s16
          %p372 = scmp.lt.s32.totalorder %s371, 3
          %s373 = scalar_select %p372, %s371, 3
          %s374 = scalar_lea.vmem %s4, %s373
        $region71: #{channel_activation_forward.1} parent=66 // pred_fallthru
          _
      $region67: #{channel_activation_forward.1} parent=5 // pred_fallthru
        _
    $region6: #{channel_activation_forward.1} parent=1 // loop_footer
      %s14 = sadd.s32 1, %s10
    $region7: #{channel_activation_forward.1} parent=1 // loop_footer_branch
      %9 = sbr.rel target = $region3
    $region8: #{channel_activation_forward.1} parent=1 // loop_exit
      _

</llo_original>
